<compile_context>
chip_gen: v6e
topology: v6e:2x2x1
jax: 0.10.0
libtpu: 0.0.40
codegen_flags: <defaults>
</compile_context>

<pallas_src>
import math

import jax
import jax.numpy as jnp
from jax.experimental import pallas as pl
from jax.experimental.pallas import tpu as pltpu


def _round_up(v, m):
    return ((v + m - 1) // m) * m


def _pad2d(x, rows, cols):
    r, c = x.shape
    if r == rows and c == cols:
        return x
    return jnp.pad(x, ((0, rows - r), (0, cols - c)))


def _vmem_budget_bytes():
    """Generation-aware VMEM budget to request from Mosaic."""
    try:
        cap = pltpu.get_tpu_info().vmem_capacity_bytes  # 128 MiB v5e/v6e, 64 MiB v7x
    except Exception:
        cap = 64 * 1024 * 1024  # conservative fallback
    # Leave headroom for Mosaic-internal scratch; never ask for more than 96 MiB.
    return int(min(cap * 3 // 4, 96 * 1024 * 1024))


def _matmul_pallas(a, b, bias=None, *, out_dtype=jnp.float32,
                   compute_dtype=jnp.bfloat16):
    """out[M, N] = a[M, K] @ b[K, N] (+ bias[N]) with f32 MXU accumulation.

    `a` may stay in f32: it is cast to `compute_dtype` on-chip (saves a full
    HBM cast pass when `a` streams exactly once).  `b` is cast to
    `compute_dtype` here (no-op if already bf16).
    """
    m, k = a.shape
    k2, n = b.shape
    assert k == k2, (a.shape, b.shape)
    b = b.astype(compute_dtype)

    has_bias = bias is not None
    bias2d = bias.reshape(1, n).astype(jnp.float32) if has_bias else None

    budget = _vmem_budget_bytes()
    a_elt = jnp.dtype(a.dtype).itemsize
    c_elt = jnp.dtype(compute_dtype).itemsize
    o_elt = jnp.dtype(out_dtype).itemsize

    # Approximate VMEM footprint of a fully-resident B operand (sublane/lane
    # padded).
    b_bytes = _round_up(k, 16) * _round_up(n, 128) * c_elt

    # ------------------------------------------------------------------
    # Path 1: B fully VMEM-resident.  grid = (M tiles,), no K loop, no
    # accumulator RMW; A and the output stream through HBM exactly once.
    # ------------------------------------------------------------------
    if b_bytes <= budget // 2:
        a_row = _round_up(k, 128) * a_elt
        o_row = _round_up(n, 128) * o_elt
        avail = max(budget - b_bytes, 1)

        tm_cap = 1024
        tm = m if m <= tm_cap else tm_cap
        # Shrink the M tile until (triple-buffered A + double-buffered out)
        # fits next to the resident B.
        while tm > 8 and tm * (3 * a_row + 2 * o_row) > avail:
            tm = _round_up(max(tm // 2, 8), 8)
        # v7x megacore: a large M axis must split into >= 2 tiles so both
        # TensorCores get work; tiny M stays a single full-extent block.
        if m >= 1024 and pl.cdiv(m, tm) < 2:
            tm = _round_up(pl.cdiv(m, 2), 8)
        grid_m = pl.cdiv(m, tm)

        if grid_m >= 3:
            # Deeper pipelining on the streamed operand hides HBM fetch jitter.
            a_spec = pl.BlockSpec((tm, k), lambda i: (i, 0),
                                  pipeline_mode=pl.Buffered(3))
        else:
            a_spec = pl.BlockSpec((tm, k), lambda i: (i, 0))
        b_spec = pl.BlockSpec((k, n), lambda i: (0, 0))  # constant index: DMA'd once

        def _kernel(a_ref, b_ref, o_ref):
            acc = jnp.dot(a_ref[...].astype(compute_dtype), b_ref[...],
                          preferred_element_type=jnp.float32)
            o_ref[...] = acc.astype(o_ref.dtype)

        def _kernel_bias(a_ref, b_ref, bias_ref, o_ref):
            acc = jnp.dot(a_ref[...].astype(compute_dtype), b_ref[...],
                          preferred_element_type=jnp.float32)
            o_ref[...] = (acc + bias_ref[...]).astype(o_ref.dtype)

        in_specs = [a_spec, b_spec]
        operands = [a, b]
        kernel = _kernel
        if has_bias:
            in_specs.append(pl.BlockSpec((1, n), lambda i: (0, 0)))
            operands.append(bias2d)
            kernel = _kernel_bias

        cost = pl.CostEstimate(
            flops=2 * m * k * n,
            transcendentals=0,
            bytes_accessed=int(m * k * a_elt + k * n * c_elt + m * n * o_elt),
        )
        return pl.pallas_call(
            kernel,
            out_shape=jax.ShapeDtypeStruct((m, n), out_dtype),
            grid_spec=pltpu.PrefetchScalarGridSpec(
                num_scalar_prefetch=0,
                grid=(grid_m,),
                in_specs=in_specs,
                out_specs=pl.BlockSpec((tm, n), lambda i: (i, 0)),
            ),
            compiler_params=pltpu.CompilerParams(
                dimension_semantics=("parallel",),
                vmem_limit_bytes=budget,
            ),
            cost_estimate=cost,
        )(*operands)

    # ------------------------------------------------------------------
    # Path 2 (fallback: B too large for VMEM): (M, N, K)-tiled matmul with an
    # f32 VMEM accumulator.  K is tiled, so it is zero-padded explicitly;
    # padded M/N rows/cols are sliced off the output.
    # ------------------------------------------------------------------
    tm = min(512, _round_up(m, 8))
    tn = min(512, _round_up(n, 128))
    tk = min(2048, _round_up(k, 128))
    mp, kp, np_ = _round_up(m, tm), _round_up(k, tk), _round_up(n, tn)
    a_p = _pad2d(a.astype(compute_dtype), mp, kp)
    b_p = _pad2d(b, kp, np_)

    def _acc_kernel(a_ref, b_ref, o_ref, acc_ref):
        @pl.when(pl.program_id(2) == 0)
        def _init():
            acc_ref[...] = jnp.zeros_like(acc_ref)

        acc_ref[...] += jnp.dot(a_ref[...], b_ref[...],
                                preferred_element_type=jnp.float32)

        @pl.when(pl.program_id(2) == pl.num_programs(2) - 1)
        def _store():
            o_ref[...] = acc_ref[...].astype(o_ref.dtype)

    def _acc_kernel_bias(a_ref, b_ref, bias_ref, o_ref, acc_ref):
        @pl.when(pl.program_id(2) == 0)
        def _init():
            acc_ref[...] = jnp.zeros_like(acc_ref)

        acc_ref[...] += jnp.dot(a_ref[...], b_ref[...],
                                preferred_element_type=jnp.float32)

        @pl.when(pl.program_id(2) == pl.num_programs(2) - 1)
        def _store():
            o_ref[...] = (acc_ref[...] + bias_ref[...]).astype(o_ref.dtype)

    in_specs = [pl.BlockSpec((tm, tk), lambda i, j, kk: (i, kk)),
                pl.BlockSpec((tk, tn), lambda i, j, kk: (kk, j))]
    operands = [a_p, b_p]
    kernel = _acc_kernel
    if has_bias:
        in_specs.append(pl.BlockSpec((1, tn), lambda i, j, kk: (0, j)))
        operands.append(_pad2d(bias2d, 1, np_))
        kernel = _acc_kernel_bias

    cost = pl.CostEstimate(
        flops=2 * mp * kp * np_,
        transcendentals=0,
        bytes_accessed=int(a_p.size * c_elt * (np_ // tn)
                           + b_p.size * c_elt * (mp // tm)
                           + mp * np_ * o_elt),
    )
    out = pl.pallas_call(
        kernel,
        out_shape=jax.ShapeDtypeStruct((mp, np_), out_dtype),
        grid_spec=pltpu.PrefetchScalarGridSpec(
            num_scalar_prefetch=0,
            grid=(mp // tm, np_ // tn, kp // tk),
            in_specs=in_specs,
            out_specs=pl.BlockSpec((tm, tn), lambda i, j, kk: (i, j)),
            scratch_shapes=[pltpu.VMEM((tm, tn), jnp.float32)],
        ),
        compiler_params=pltpu.CompilerParams(
            dimension_semantics=("parallel", "parallel", "arbitrary"),
            vmem_limit_bytes=budget,
        ),
        cost_estimate=cost,
    )(*operands)
    return out[:m, :n]


def graph_convolution(x, adj, weight, bias=None, *, compute_dtype=jnp.bfloat16):
    """Pallas GCN forward (matches the PyTorch module's forward).

    x      : [num_nodes, batch, in_features]   (f32)
    adj    : [num_nodes, num_nodes]            (dense; torch.spmm w/ dense rhs == matmul)
    weight : [in_features, out_features]
    bias   : optional [out_features]           (module adds it BEFORE spmm)
    returns: [num_nodes, batch, out_features]  (f32)
    """
    n, b, k = x.shape
    p = weight.shape[1]

    # Step 1: support[j*B+i, p] = sum_k x[j,i,k] * W[k,p]   ('jik,kp->jip').
    # W is VMEM-resident, x streams once (f32 in HBM, cast to bf16 on-chip),
    # bias is fused into the epilogue, and the intermediate comes out in bf16.
    x2d = x.reshape(n * b, k)
    support2d = _matmul_pallas(x2d, weight, bias=bias,
                               out_dtype=compute_dtype,
                               compute_dtype=compute_dtype)          # [N*B, P] bf16

    # [N*B, P] -> [N, B*P] is a contiguous reshape: a free HBM view.
    support = support2d.reshape(n, b * p)

    # Step 2: out = adj @ support (dominant 2*N^2*B*P flops; HBM-bound).
    # `support` is held fully VMEM-resident when it fits, so both adj and
    # support touch HBM exactly once.
    # TODO(synk): a genuinely sparse `adj` (torch.spmm) would need a CSR
    # gather/accumulate kernel; adj is treated as dense here.
    out2d = _matmul_pallas(adj, support, out_dtype=jnp.float32,
                           compute_dtype=compute_dtype)              # [N, B*P] f32

    return out2d.reshape(n, b, p)


if __name__ == "__main__":
    # Small, module-consistent shapes.
    num_nodes = 8
    batch_size = 4
    in_features = 16
    out_features = 32

    key = jax.random.PRNGKey(0)
    k_x, k_adj, k_w, k_b = jax.random.split(key, 4)

    # reset_parameters(): weight ~ U(-stdv, stdv), stdv = 1/sqrt(out_features).
    stdv = 1.0 / math.sqrt(out_features)
    weight = jax.random.uniform(k_w, (in_features, out_features), jnp.float32,
                                minval=-stdv, maxval=stdv)

    x = jax.random.normal(k_x, (num_nodes, batch_size, in_features), jnp.float32)
    # Dense row-normalized adjacency (stand-in for the sparse adj of torch.spmm).
    adj_raw = (jax.random.uniform(k_adj, (num_nodes, num_nodes)) > 0.5).astype(
        jnp.float32) + jnp.eye(num_nodes, dtype=jnp.float32)
    adj = adj_raw / jnp.sum(adj_raw, axis=1, keepdims=True)

    # --- bias=False (module default) ---
    out = jax.block_until_ready(graph_convolution(x, adj, weight))
    support_ref = jnp.einsum("jik,kp->jip", x, weight).reshape(num_nodes, -1)
    ref = (adj @ support_ref).reshape(num_nodes, batch_size, out_features)
    assert out.shape == (num_nodes, batch_size, out_features)
    assert jnp.allclose(out, ref, atol=2e-2, rtol=2e-2), float(
        jnp.max(jnp.abs(out - ref)))

    # --- bias=True path (bias fused into the first kernel's epilogue) ---
    bias = jax.random.uniform(k_b, (out_features,), jnp.float32,
                              minval=-0.5, maxval=0.5)
    out_b = jax.block_until_ready(graph_convolution(x, adj, weight, bias=bias))
    support_ref_b = (jnp.einsum("jik,kp->jip", x, weight) + bias).reshape(
        num_nodes, -1)
    ref_b = (adj @ support_ref_b).reshape(num_nodes, batch_size, out_features)
    assert jnp.allclose(out_b, ref_b, atol=2e-2, rtol=2e-2), float(
        jnp.max(jnp.abs(out_b - ref_b)))

    print("KERNEL_OK")
</pallas_src>

<mosaic_0001>
module attributes {stable_mosaic.version = 11 : i64} {
  func.func @_kernel(%arg0: i32, %arg1: memref<32x16xf32, #tpu.memory_space<vmem>>, %arg2: memref<16x32xbf16, #tpu.memory_space<vmem>>, %arg3: memref<32x32xbf16, #tpu.memory_space<vmem>>) attributes {dimension_semantics = [#tpu.dimension_semantics<parallel>], iteration_bounds = array<i64: 1>, scalar_prefetch = 0 : i64, scratch_operands = 0 : i64, tpu.core_type = #tpu.core_type<tc>, window_params = [{transform_indices = @transform_0, window_bounds = array<i64: 32, 16>}, {pipeline_mode = #tpu.pipeline_mode<synchronous>, transform_indices = @transform_1, window_bounds = array<i64: 16, 32>}, {transform_indices = @transform_2, window_bounds = array<i64: 32, 32>}]} {
    %c0 = arith.constant 0 : index
    %c0_0 = arith.constant 0 : index
    %0 = vector.load %arg1[%c0, %c0_0] : memref<32x16xf32, #tpu.memory_space<vmem>>, vector<32x16xf32>
    %1 = arith.truncf %0 : vector<32x16xf32> to vector<32x16xbf16>
    %c0_1 = arith.constant 0 : index
    %c0_2 = arith.constant 0 : index
    %2 = vector.load %arg2[%c0_1, %c0_2] : memref<16x32xbf16, #tpu.memory_space<vmem>>, vector<16x32xbf16>
    %cst = arith.constant dense<0.000000e+00> : vector<32x32xf32>
    %3 = tpu.matmul %1, %2, %cst {dimension_numbers = #tpu.dot_dimension_numbers<[1], [0], [0], [1], [0, 0, 1, 1], [], []>} : vector<32x16xbf16>, vector<16x32xbf16>, vector<32x32xf32> -> vector<32x32xf32>
    %4 = arith.truncf %3 : vector<32x32xf32> to vector<32x32xbf16>
    %c0_3 = arith.constant 0 : index
    %c0_4 = arith.constant 0 : index
    %5 = vector.load %arg3[%c0_3, %c0_4] : memref<32x32xbf16, #tpu.memory_space<vmem>>, vector<32x32xbf16>
    tpu.vector_store %arg3[%c0_3, %c0_4], %4 {strides = array<i32>} : memref<32x32xbf16, #tpu.memory_space<vmem>>, vector<32x32xbf16>,
    return
  }
  func.func @transform_0(%arg0: i32) -> (i32, i32) {
    %c0_i32 = arith.constant 0 : i32
    %c0_i32_0 = arith.constant 0 : i32
    return %arg0, %c0_i32 : i32, i32
  }
  func.func @transform_1(%arg0: i32) -> (i32, i32) {
    %c0_i32 = arith.constant 0 : i32
    %c0_i32_0 = arith.constant 0 : i32
    %c0_i32_1 = arith.constant 0 : i32
    return %c0_i32, %c0_i32_0 : i32, i32
  }
  func.func @transform_2(%arg0: i32) -> (i32, i32) {
    %c0_i32 = arith.constant 0 : i32
    %c0_i32_0 = arith.constant 0 : i32
    return %arg0, %c0_i32 : i32, i32
  }
}

</mosaic_0001>

<llo_original>
// kernel: tpu_custom_call.1
$region0: #{tpu_custom_call.1}
  #allocation0 [shape = 'u32[]', space=smem, size = 0x4, offset = 0x4, fixed_abs, tag = 'smem constant byte address 0x4 - core index']
  #allocation1 [shape = 'u32[144,128]{1,0:T(1,128)}', space=vmem, size = 0x12000, scoped, tag = 'internal scratch']
  %s0 = inlined_call_operand.vmem [shape: f32[32,16], index: 0, kind: input, shape index: {}]
  %s1 = inlined_call_operand.vmem [shape: bf16[16,32], index: 1, kind: input, shape index: {}]
  %s2 = inlined_call_operand.hbm [shape: bf16[32,32], index: 2, kind: output, shape index: {}]
  %s3 = sld [smem:[#allocation0]]
  $region18: #{tpu_custom_call.1} parent=0
    _
  %s5 = ssub.s32 1, %s3
  %s6 = scalar_select 0, %s5, %s3
  $region1: #{tpu_custom_call.1} parent=0
    #allocation2 [shape = 'u8[8192]{0}', space=vmem, size = 0x2000, scoped, tag = 'output window, operand 0, single buffered']
    #allocation3 [shape = 's32[1]{0}', space=sflag, size = 0x4, scoped, tag = 'scoped memory for tpu_custom_call.1']
    %7 = vsyncpa [#allocation3], 0
    // Predicated region
    $region2: #{tpu_custom_call.1} parent=1 // pred_check
      _
    $region3: #{tpu_custom_call.1} parent=1 // pred_check_branch
      %9 = sbr.rel (0) target = $region5
    $region4: #{tpu_custom_call.1} parent=1 // pred_region
      _
    $region5: #{tpu_custom_call.1} parent=1 // pred_fallthru
      _
    // Predicated region
    $region6: #{tpu_custom_call.1} parent=1 // pred_check
      _
    $region7: #{tpu_custom_call.1} parent=1 // pred_check_branch
      %11 = sbr.rel (0) target = $region9
    $region8: #{tpu_custom_call.1} parent=1 // pred_region
      _
    $region9: #{tpu_custom_call.1} parent=1 // pred_fallthru
      _
    %v13 = vld [vmem:[%s0] sm:$0xff]
    %v14 = vld [vmem:[%s0 + $0x8] sm:$0xff]
    %v15 = vld [vmem:[%s0 + $0x10] sm:$0xff]
    %v16 = vld [vmem:[%s0 + $0x18] sm:$0xff]
    %v17 = vpack.c.bf16 %v14, %v13
    %v18 = vpack.c.bf16 %v16, %v15
    %v19 = vld [vmem:[%s1] sm:$0xf]
    %v20 = vld [vmem:[%s1 + $0x4] sm:$0xf]
    %v23 = vunpack.c.l.b16 %v19
    %v24 = vunpack.c.l.b16 %v20
    %v25 = vpack.c.b16 %v24, %v23
    %vm27 = vcmask 130048
    %v29 = vsel %vm27, %v17, 0
    %v32 = vsel %vm27, %v18, 0
    %34 = vmatprep.subr.bf16.mxu0 0
    %35 = vmatpush1.bf16.msra.mxu0 0
    %36 = vmatprep.subr.bf16.mxu0 0
    %37 = vmatpush1.bf16.msra.mxu0 0
    %38 = vmatprep.subr.bf16.mxu0 0
    %39 = vmatpush1.bf16.msra.mxu0 0
    %40 = vmatprep.subr.bf16.mxu0 0
    %41 = vmatpush1.bf16.msra.mxu0 0
    %42 = vmatprep.subr.bf16.mxu0 0
    %43 = vmatpush1.bf16.msra.mxu0 0
    %44 = vmatprep.subr.bf16.mxu0 0
    %45 = vmatpush1.bf16.msra.mxu0 0
    %46 = vmatprep.subr.bf16.mxu0 0
    %47 = vmatpush1.bf16.msra.mxu0 0
    %48 = vmatprep.subr.bf16.mxu0 0
    %49 = vmatpush1.bf16.msra.mxu0 %v25
    %50 = vmatprep.subr.bf16.mxu0 0
    %51 = vmatpush2.bf16.msra.mxu0 0
    %52 = vmatprep.subr.bf16.mxu0 0
    %53 = vmatpush2.bf16.msra.mxu0 0
    %54 = vmatprep.subr.bf16.mxu0 0
    %55 = vmatpush2.bf16.msra.mxu0 0
    %56 = vmatprep.subr.bf16.mxu0 0
    %57 = vmatpush2.bf16.msra.mxu0 0
    %58 = vmatprep.subr.bf16.mxu0 0
    %59 = vmatpush2.bf16.msra.mxu0 0
    %60 = vmatprep.subr.bf16.mxu0 0
    %61 = vmatpush2.bf16.msra.mxu0 0
    %62 = vmatprep.subr.bf16.mxu0 0
    %63 = vmatpush2.bf16.msra.mxu0 0
    %64 = vmatprep.subr.bf16.mxu0 0
    %65 = vmatpush2.bf16.msra.mxu0 0
    %66 = vmatprep.mubr.bf16.mxu0 0
    %67 = vmatmul.mubr.bf16.gmra.mxu0 %v29
    %v68 = vpop.f32.mrf.mxu0
    %v69 = vadd.f32 0.0, %v68
    %v70 = vpop.f32.mrf.mxu0
    %v71 = vpop.f32.mrf.mxu0
    %v72 = vadd.f32 0.0, %v71
    %v73 = vpop.f32.mrf.mxu0
    %74 = vmatprep.mubr.bf16.mxu0 0
    %75 = vmatmul.mubr.bf16.gmra.mxu0 %v32
    %v76 = vpop.f32.mrf.mxu0
    %v77 = vadd.f32 0.0, %v76
    %v78 = vpop.f32.mrf.mxu0
    %v79 = vpop.f32.mrf.mxu0
    %v80 = vadd.f32 0.0, %v79
    %v81 = vpop.f32.mrf.mxu0
    %82 = vdwg.mxu0
    %v83 = vpack.c.bf16 %v72, %v69
    %v84 = vpack.c.bf16 %v80, %v77
    %v87 = vunpack.c.l.b16 %v83
    %v88 = vunpack.c.h.b16 %v83
    %v89 = vunpack.c.l.b16 %v84
    %v90 = vunpack.c.h.b16 %v84
    %v91 = vpack.c.b16 %v87, %v87
    %v92 = vpack.c.b16 %v88, %v88
    %v93 = vpack.c.b16 %v89, %v89
    %v94 = vpack.c.b16 %v90, %v90
    %vm99 = vcmask 257024
    %100 = vst.msk [vmem:[#allocation2] sm:$0xf] %vm99, %v91
    %101 = vst.msk [vmem:[#allocation2 + $0x4] sm:$0xf] %vm99, %v92
    %102 = vst.msk [vmem:[#allocation2 + $0x8] sm:$0xf] %vm99, %v93
    %103 = vst.msk [vmem:[#allocation2 + $0xc] sm:$0xf] %vm99, %v94
    // Predicated region
    $region10: #{tpu_custom_call.1} parent=1 // pred_check
      _
    $region11: #{tpu_custom_call.1} parent=1 // pred_check_branch
      %105 = sbr.rel (0) target = $region13
    $region12: #{tpu_custom_call.1} parent=1 // pred_region
      %s107 = ssub.s32 256, 256
      %108 = vsyncadd [#allocation3], %s107
      %s109 = sshll.u32 [#allocation2], 4
      %s110 = int_to_ptr.vmem [resolvable:$true] %s109
      %115 = dma.vmem_to_hbm [thread:$0]  %s110, 256, %s2, [#allocation3], 64, 64, 4
    $region13: #{tpu_custom_call.1} parent=1 // pred_fallthru
      _
    // Predicated region
    $region14: #{tpu_custom_call.1} parent=1 // pred_check
      _
    $region15: #{tpu_custom_call.1} parent=1 // pred_check_branch
      %117 = sbr.rel (0) target = $region17
    $region16: #{tpu_custom_call.1} parent=1 // pred_region
      %118 = dma.done [#allocation3], 256
    $region17: #{tpu_custom_call.1} parent=1 // pred_fallthru
      _
    %119 = vsyncpa [#allocation3], 1

</llo_original>
